<compile_context>
chip_gen: v5e
topology: v5e:2x2
jax: 0.10.0
libtpu: 0.0.40
codegen_flags: <defaults>
</compile_context>

<pallas_src>
import functools

import jax
import jax.numpy as jnp
import numpy as np
from jax.experimental import pallas as pl
from jax.experimental.pallas import tpu as pltpu

LANE = 128


def _round_up(x, m):
    return (x + m - 1) // m * m


def _sublane(dtype):
    # sublane packing multiple for a dtype: f32 -> 8, bf16 -> 16, int8/fp8 -> 32
    return {4: 8, 2: 16, 1: 32}[jnp.dtype(dtype).itemsize]


# ----------------------------- kernel ---------------------------------------


def fnn_kernel(x_ref, w1_ref, t1_ref, w2_ref, t2_ref, w3_ref, b3_ref, o_ref):
    # fc1: BN1 scale pre-folded into w1 columns; add folded shift; ReLU.
    # MXU accumulates in f32; elementwise math in f32.
    h1 = jnp.dot(x_ref[...], w1_ref[...], preferred_element_type=jnp.float32)
    h1 = jnp.maximum(h1 + t1_ref[...], 0.0)
    # dropout: identity in eval mode.
    # fc2: BN2 scale pre-folded into w2 columns. Cast activation to the weight
    # dtype so bf16 weights give a bf16 x bf16 MXU matmul (no-op in f32 path).
    h2 = jnp.dot(h1.astype(w2_ref.dtype), w2_ref[...],
                 preferred_element_type=jnp.float32)
    h2 = jnp.maximum(h2 + t2_ref[...], 0.0)
    # fc3 + bias.  Output slab is lane-dense (classes padded to 128-multiple).
    o_ref[...] = (jnp.dot(h2.astype(w3_ref.dtype), w3_ref[...],
                          preferred_element_type=jnp.float32)
                  + b3_ref[...])


# ----------------------------- wrapper ---------------------------------------


def prepare_params(p, operand_dtype=jnp.bfloat16):
    """Fold BN scales into weight columns, zero-pad output feature dims to
    128-multiples, cast matmul operands to operand_dtype (shifts stay f32)."""
    Din, H = p["w1"].shape
    E = p["w2"].shape[1]
    C = p["w3"].shape[1]
    Hp, Ep, Cp = (_round_up(d, LANE) for d in (H, E, C))

    def pad2(a, rows, cols, dtype):
        out = jnp.zeros((rows, cols), dtype)
        return out.at[:a.shape[0], :a.shape[1]].set(a.astype(dtype))

    # Fold in f32, then cast (matches the bf16-emulating reference).
    w1s = p["w1"] * p["s1"]
    w2s = p["w2"] * p["s2"]
    return dict(
        w1=pad2(w1s, Din, Hp, operand_dtype),
        t1=pad2(p["t1"], 1, Hp, jnp.float32),
        w2=pad2(w2s, Hp, Ep, operand_dtype),
        t2=pad2(p["t2"], 1, Ep, jnp.float32),
        w3=pad2(p["w3"], Ep, Cp, operand_dtype),
        b3=pad2(p["b3"], 1, Cp, jnp.float32),
    )


def _vmem_limit_bytes(tb, Din, Hp, Ep, Cp, opd_bytes):
    weights = (Din * Hp + Hp * Ep + Ep * Cp) * opd_bytes   # single-buffered
    vecs = 2 * (Hp + Ep + Cp) * 4                          # shifts / bias
    x_tiles = 2 * tb * Din * opd_bytes                     # double-buffered
    o_tiles = 2 * tb * Cp * 4
    inter = tb * (Hp + Ep) * (4 + opd_bytes)               # f32 h + operand cast
    est = weights + vecs + x_tiles + o_tiles + inter
    # 2x margin for (8,128) tile padding / compiler scratch; never below the
    # default scoped limit, capped so it stays sane on every generation.
    return int(min(max(2 * est, 32 << 20), 100 << 20))


@functools.partial(jax.jit, static_argnames=("num_classes", "tb"))
def fnn_forward(x, packed, *, num_classes, tb=None):
    """x: (B, input_dim) float32.  packed: output of prepare_params()."""
    B, Din = x.shape
    op_dtype = packed["w1"].dtype
    opd_bytes = jnp.dtype(op_dtype).itemsize
    sub = _sublane(op_dtype)
    Hp = packed["w1"].shape[1]
    Ep = packed["w2"].shape[1]
    Cp = packed["w3"].shape[1]

    # Batch tile: sublane-packed for the operand dtype; >= 2 grid steps when
    # the batch allows it (both v7x TensorCores get work); capped so x/out
    # tiles + f32 intermediates stay small next to the resident weights.
    if tb is None:
        tb = max(sub, min(256, _round_up(-(-B // 2), sub)))
    Bp = _round_up(B, tb)

    # Cast to the MXU operand dtype; pad batch only when needed (no Din pad).
    xo = x.astype(op_dtype)
    if Bp != B:
        xo = jnp.zeros((Bp, Din), op_dtype).at[:B].set(xo)

    # Constant-index operands: single pipeline buffer (they never change).
    const = lambda shape: pl.BlockSpec(shape, lambda i: (0, 0),
                                       pipeline_mode=pl.Buffered(1))

    flops = 2 * Bp * (Din * Hp + Hp * Ep + Ep * Cp)
    bytes_accessed = (Bp * Din * opd_bytes + Bp * Cp * 4
                      + (Din * Hp + Hp * Ep + Ep * Cp) * opd_bytes
                      + (Hp + Ep + Cp) * 4)

    out = pl.pallas_call(
        fnn_kernel,
        out_shape=jax.ShapeDtypeStruct((Bp, Cp), jnp.float32),
        grid_spec=pltpu.PrefetchScalarGridSpec(
            num_scalar_prefetch=0,
            grid=(Bp // tb,),
            in_specs=[
                pl.BlockSpec((tb, Din), lambda i: (i, 0)),   # x tile
                const((Din, Hp)),                            # w1 * bn1_scale
                const((1, Hp)),                              # bn1 folded shift
                const((Hp, Ep)),                             # w2 * bn2_scale
                const((1, Ep)),                              # bn2 folded shift
                const((Ep, Cp)),                             # w3
                const((1, Cp)),                              # b3
            ],
            out_specs=pl.BlockSpec((tb, Cp), lambda i: (i, 0)),
        ),
        compiler_params=pltpu.CompilerParams(
            dimension_semantics=("parallel",),
            vmem_limit_bytes=_vmem_limit_bytes(tb, Din, Hp, Ep, Cp, opd_bytes)),
        cost_estimate=pl.CostEstimate(flops=flops, transcendentals=0,
                                      bytes_accessed=bytes_accessed),
    )(xo, packed["w1"], packed["t1"], packed["w2"], packed["t2"],
      packed["w3"], packed["b3"])

    # Strip batch / class padding.
    return out[:B, :num_classes]


# ----------------------------- params & references ---------------------------


def make_params(key, input_dim, hidden_dim, extra_hidden_dim, num_classes):
    """Deterministic synthetic parameters; BatchNorm folded into scale/shift."""
    ks = jax.random.split(key, 14)
    eps = 1e-5

    def linear(kw, kb, fan_in, fan_out):
        bound = 1.0 / np.sqrt(fan_in)
        w = jax.random.uniform(kw, (fan_in, fan_out), jnp.float32, -bound, bound)
        b = jax.random.uniform(kb, (1, fan_out), jnp.float32, -bound, bound)
        return w, b

    w1, b1 = linear(ks[0], ks[1], input_dim, hidden_dim)
    w2, b2 = linear(ks[2], ks[3], hidden_dim, extra_hidden_dim)
    w3, b3 = linear(ks[4], ks[5], extra_hidden_dim, num_classes)

    def bn_fold(kg, kb, km, kv, bias, dim):
        gamma = 1.0 + 0.1 * jax.random.normal(kg, (1, dim), jnp.float32)
        beta = 0.1 * jax.random.normal(kb, (1, dim), jnp.float32)
        mean = 0.1 * jax.random.normal(km, (1, dim), jnp.float32)
        var = jnp.abs(jax.random.normal(kv, (1, dim), jnp.float32)) + 0.5
        scale = gamma / jnp.sqrt(var + eps)
        # (z + bias - mean) * scale + beta == z*scale + ((bias - mean)*scale + beta)
        shift = (bias - mean) * scale + beta
        return scale, shift

    s1, t1 = bn_fold(ks[6], ks[7], ks[8], ks[9], b1, hidden_dim)
    s2, t2 = bn_fold(ks[10], ks[11], ks[12], ks[13], b2, extra_hidden_dim)

    return dict(w1=w1, s1=s1, t1=t1, w2=w2, s2=s2, t2=t2, w3=w3, b3=b3)


def fnn_ref(x, p):
    h1 = jnp.maximum((x @ p["w1"]) * p["s1"] + p["t1"], 0.0)
    h2 = jnp.maximum((h1 @ p["w2"]) * p["s2"] + p["t2"], 0.0)
    return h2 @ p["w3"] + p["b3"]


def fnn_ref_bf16(x, p):
    """Reference emulating bf16 MXU operands (scale folded into weights before
    the bf16 cast, exactly like the kernel path) with f32 accumulation."""
    bf = lambda a: a.astype(jnp.bfloat16).astype(jnp.float32)
    h1 = jnp.maximum(bf(x) @ bf(p["w1"] * p["s1"]) + p["t1"], 0.0)
    h2 = jnp.maximum(bf(h1) @ bf(p["w2"] * p["s2"]) + p["t2"], 0.0)
    return bf(h2) @ bf(p["w3"]) + p["b3"]


# ----------------------------- test ------------------------------------------

if __name__ == "__main__":
    B, input_dim, hidden_dim, extra_hidden_dim, num_classes = 16, 32, 64, 32, 8

    key = jax.random.PRNGKey(0)
    kx, kp = jax.random.split(key)
    x = jax.random.normal(kx, (B, input_dim), jnp.float32)
    params = make_params(kp, input_dim, hidden_dim, extra_hidden_dim, num_classes)

    # Default path: bf16 MXU operands on every generation (v5e/v6e/v7x MXUs are
    # natively bf16) — compare against a bf16-emulating reference.
    p_bf16 = prepare_params(params, jnp.bfloat16)
    out_bf16 = jax.block_until_ready(
        fnn_forward(x, p_bf16, num_classes=num_classes))
    np.testing.assert_allclose(np.asarray(out_bf16),
                               np.asarray(fnn_ref_bf16(x, params)),
                               rtol=2e-2, atol=2e-2)

    # f32-operand sanity path (slightly looser tolerance: MXU f32 matmuls are
    # multi-pass bf16 emulation).
    p_f32 = prepare_params(params, jnp.float32)
    out_f32 = jax.block_until_ready(
        fnn_forward(x, p_f32, num_classes=num_classes))
    np.testing.assert_allclose(np.asarray(out_f32),
                               np.asarray(fnn_ref(x, params)),
                               rtol=1e-4, atol=1e-4)

    print("KERNEL_OK")
</pallas_src>

<mosaic_0001>
module attributes {stable_mosaic.version = 11 : i64} {
  func.func @fnn_kernel(%arg0: i32, %arg1: memref<16x32xbf16, #tpu.memory_space<vmem>>, %arg2: memref<32x128xbf16, #tpu.memory_space<vmem>>, %arg3: memref<1x128xf32, #tpu.memory_space<vmem>>, %arg4: memref<128x128xbf16, #tpu.memory_space<vmem>>, %arg5: memref<1x128xf32, #tpu.memory_space<vmem>>, %arg6: memref<128x128xbf16, #tpu.memory_space<vmem>>, %arg7: memref<1x128xf32, #tpu.memory_space<vmem>>, %arg8: memref<16x128xf32, #tpu.memory_space<vmem>>) attributes {dimension_semantics = [#tpu.dimension_semantics<parallel>], iteration_bounds = array<i64: 1>, scalar_prefetch = 0 : i64, scratch_operands = 0 : i64, tpu.core_type = #tpu.core_type<tc>, window_params = [{transform_indices = @transform_0, window_bounds = array<i64: 16, 32>}, {pipeline_mode = #tpu.pipeline_mode<synchronous>, transform_indices = @transform_1, window_bounds = array<i64: 32, 128>}, {pipeline_mode = #tpu.pipeline_mode<synchronous>, transform_indices = @transform_2, window_bounds = array<i64: 1, 128>}, {pipeline_mode = #tpu.pipeline_mode<synchronous>, transform_indices = @transform_3, window_bounds = array<i64: 128, 128>}, {pipeline_mode = #tpu.pipeline_mode<synchronous>, transform_indices = @transform_4, window_bounds = array<i64: 1, 128>}, {pipeline_mode = #tpu.pipeline_mode<synchronous>, transform_indices = @transform_5, window_bounds = array<i64: 128, 128>}, {pipeline_mode = #tpu.pipeline_mode<synchronous>, transform_indices = @transform_6, window_bounds = array<i64: 1, 128>}, {transform_indices = @transform_7, window_bounds = array<i64: 16, 128>}]} {
    %c0 = arith.constant 0 : index
    %c0_0 = arith.constant 0 : index
    %0 = vector.load %arg1[%c0, %c0_0] : memref<16x32xbf16, #tpu.memory_space<vmem>>, vector<16x32xbf16>
    %c0_1 = arith.constant 0 : index
    %c0_2 = arith.constant 0 : index
    %1 = vector.load %arg2[%c0_1, %c0_2] : memref<32x128xbf16, #tpu.memory_space<vmem>>, vector<32x128xbf16>
    %cst = arith.constant dense<0.000000e+00> : vector<16x128xf32>
    %2 = tpu.matmul %0, %1, %cst {dimension_numbers = #tpu.dot_dimension_numbers<[1], [0], [0], [1], [0, 0, 1, 1], [], []>} : vector<16x32xbf16>, vector<32x128xbf16>, vector<16x128xf32> -> vector<16x128xf32>
    %c0_3 = arith.constant 0 : index
    %c0_4 = arith.constant 0 : index
    %3 = vector.load %arg3[%c0_3, %c0_4] : memref<1x128xf32, #tpu.memory_space<vmem>>, vector<1x128xf32>
    %4 = vector.broadcast %3 : vector<1x128xf32> to vector<16x128xf32>
    %5 = arith.addf %2, %4 : vector<16x128xf32>
    %cst_5 = arith.constant 0.000000e+00 : f32
    %6 = vector.broadcast %cst_5 : f32 to vector<16x128xf32>
    %7 = arith.maximumf %5, %6 : vector<16x128xf32>
    %8 = arith.truncf %7 : vector<16x128xf32> to vector<16x128xbf16>
    %c0_6 = arith.constant 0 : index
    %c0_7 = arith.constant 0 : index
    %9 = vector.load %arg4[%c0_6, %c0_7] : memref<128x128xbf16, #tpu.memory_space<vmem>>, vector<128x128xbf16>
    %cst_8 = arith.constant dense<0.000000e+00> : vector<16x128xf32>
    %10 = tpu.matmul %8, %9, %cst_8 {dimension_numbers = #tpu.dot_dimension_numbers<[1], [0], [0], [1], [0, 0, 1, 1], [], []>} : vector<16x128xbf16>, vector<128x128xbf16>, vector<16x128xf32> -> vector<16x128xf32>
    %c0_9 = arith.constant 0 : index
    %c0_10 = arith.constant 0 : index
    %11 = vector.load %arg5[%c0_9, %c0_10] : memref<1x128xf32, #tpu.memory_space<vmem>>, vector<1x128xf32>
    %12 = vector.broadcast %11 : vector<1x128xf32> to vector<16x128xf32>
    %13 = arith.addf %10, %12 : vector<16x128xf32>
    %cst_11 = arith.constant 0.000000e+00 : f32
    %14 = vector.broadcast %cst_11 : f32 to vector<16x128xf32>
    %15 = arith.maximumf %13, %14 : vector<16x128xf32>
    %16 = arith.truncf %15 : vector<16x128xf32> to vector<16x128xbf16>
    %c0_12 = arith.constant 0 : index
    %c0_13 = arith.constant 0 : index
    %17 = vector.load %arg6[%c0_12, %c0_13] : memref<128x128xbf16, #tpu.memory_space<vmem>>, vector<128x128xbf16>
    %cst_14 = arith.constant dense<0.000000e+00> : vector<16x128xf32>
    %18 = tpu.matmul %16, %17, %cst_14 {dimension_numbers = #tpu.dot_dimension_numbers<[1], [0], [0], [1], [0, 0, 1, 1], [], []>} : vector<16x128xbf16>, vector<128x128xbf16>, vector<16x128xf32> -> vector<16x128xf32>
    %c0_15 = arith.constant 0 : index
    %c0_16 = arith.constant 0 : index
    %19 = vector.load %arg7[%c0_15, %c0_16] : memref<1x128xf32, #tpu.memory_space<vmem>>, vector<1x128xf32>
    %20 = vector.broadcast %19 : vector<1x128xf32> to vector<16x128xf32>
    %21 = arith.addf %18, %20 : vector<16x128xf32>
    %c0_17 = arith.constant 0 : index
    %c0_18 = arith.constant 0 : index
    %22 = vector.load %arg8[%c0_17, %c0_18] : memref<16x128xf32, #tpu.memory_space<vmem>>, vector<16x128xf32>
    tpu.vector_store %arg8[%c0_17, %c0_18], %21 {strides = array<i32>} : memref<16x128xf32, #tpu.memory_space<vmem>>, vector<16x128xf32>,
    return
  }
  func.func @transform_0(%arg0: i32) -> (i32, i32) {
    %c0_i32 = arith.constant 0 : i32
    %c0_i32_0 = arith.constant 0 : i32
    return %arg0, %c0_i32 : i32, i32
  }
  func.func @transform_1(%arg0: i32) -> (i32, i32) {
    %c0_i32 = arith.constant 0 : i32
    %c0_i32_0 = arith.constant 0 : i32
    %c0_i32_1 = arith.constant 0 : i32
    return %c0_i32, %c0_i32_0 : i32, i32
  }
  func.func @transform_2(%arg0: i32) -> (i32, i32) {
    %c0_i32 = arith.constant 0 : i32
    %c0_i32_0 = arith.constant 0 : i32
    %c0_i32_1 = arith.constant 0 : i32
    return %c0_i32, %c0_i32_0 : i32, i32
  }
  func.func @transform_3(%arg0: i32) -> (i32, i32) {
    %c0_i32 = arith.constant 0 : i32
    %c0_i32_0 = arith.constant 0 : i32
    %c0_i32_1 = arith.constant 0 : i32
    return %c0_i32, %c0_i32_0 : i32, i32
  }
  func.func @transform_4(%arg0: i32) -> (i32, i32) {
    %c0_i32 = arith.constant 0 : i32
    %c0_i32_0 = arith.constant 0 : i32
    %c0_i32_1 = arith.constant 0 : i32
    return %c0_i32, %c0_i32_0 : i32, i32
  }
  func.func @transform_5(%arg0: i32) -> (i32, i32) {
    %c0_i32 = arith.constant 0 : i32
    %c0_i32_0 = arith.constant 0 : i32
    %c0_i32_1 = arith.constant 0 : i32
    return %c0_i32, %c0_i32_0 : i32, i32
  }
  func.func @transform_6(%arg0: i32) -> (i32, i32) {
    %c0_i32 = arith.constant 0 : i32
    %c0_i32_0 = arith.constant 0 : i32
    %c0_i32_1 = arith.constant 0 : i32
    return %c0_i32, %c0_i32_0 : i32, i32
  }
  func.func @transform_7(%arg0: i32) -> (i32, i32) {
    %c0_i32 = arith.constant 0 : i32
    %c0_i32_0 = arith.constant 0 : i32
    return %arg0, %c0_i32 : i32, i32
  }
}

</mosaic_0001>

<llo_original>
// kernel: fnn_forward.1
$region0: #{fnn_forward.1}
  #allocation0 [shape = 'u32[]', space=smem, size = 0x4, offset = 0x4, fixed_abs, tag = 'smem constant byte address 0x4 - core index']
  #allocation1 [shape = 'u32[72,128]{1,0:T(1,128)}', space=vmem, size = 0x9000, scoped, tag = 'internal scratch']
  %s0 = inlined_call_operand.vmem [shape: bf16[16,32], index: 0, kind: input, shape index: {}]
  %s1 = inlined_call_operand.vmem [shape: bf16[32,128], index: 1, kind: input, shape index: {}]
  %s2 = inlined_call_operand.vmem [shape: f32[1,128], index: 2, kind: input, shape index: {}]
  %s3 = inlined_call_operand.hbm [shape: bf16[128,128], index: 3, kind: input, shape index: {}]
  %s4 = inlined_call_operand.vmem [shape: f32[1,128], index: 4, kind: input, shape index: {}]
  %s5 = inlined_call_operand.hbm [shape: bf16[128,128], index: 5, kind: input, shape index: {}]
  %s6 = inlined_call_operand.vmem [shape: f32[1,128], index: 6, kind: input, shape index: {}]
  %s7 = inlined_call_operand.vmem [shape: f32[16,128], index: 7, kind: output, shape index: {}]
  %s8 = sld [smem:[#allocation0]]
  $region46: #{fnn_forward.1} parent=0
    _
  %s10 = ssub.s32 1, %s8
  %s11 = scalar_select 0, %s10, %s8
  $region1: #{fnn_forward.1} parent=0
    #allocation2 [shape = 'u8[32768]{0}', space=vmem, size = 0x8000, scoped, tag = 'input window, operand 3, single buffered']
    #allocation3 [shape = 's32[1]{0}', space=sflag, size = 0x4, scoped, tag = 'scoped memory for fnn_forward.1']
    #allocation4 [shape = 'u8[32768]{0}', space=vmem, size = 0x8000, scoped, tag = 'input window, operand 5, single buffered']
    #allocation5 [shape = 's32[1]{0}', space=sflag, size = 0x4, scoped, tag = 'scoped memory for fnn_forward.1']
    %12 = vsyncpa [#allocation3], 0
    %13 = vsyncpa [#allocation5], 0
    // Predicated region
    $region2: #{fnn_forward.1} parent=1 // pred_check
      _
    $region3: #{fnn_forward.1} parent=1 // pred_check_branch
      %15 = sbr.rel (0) target = $region5
    $region4: #{fnn_forward.1} parent=1 // pred_region
      _
    $region5: #{fnn_forward.1} parent=1 // pred_fallthru
      _
    // Predicated region
    $region6: #{fnn_forward.1} parent=1 // pred_check
      _
    $region7: #{fnn_forward.1} parent=1 // pred_check_branch
      %17 = sbr.rel (0) target = $region9
    $region8: #{fnn_forward.1} parent=1 // pred_region
      _
    $region9: #{fnn_forward.1} parent=1 // pred_fallthru
      _
    // Predicated region
    $region10: #{fnn_forward.1} parent=1 // pred_check
      _
    $region11: #{fnn_forward.1} parent=1 // pred_check_branch
      %19 = sbr.rel (0) target = $region13
    $region12: #{fnn_forward.1} parent=1 // pred_region
      _
    $region13: #{fnn_forward.1} parent=1 // pred_fallthru
      _
    // Predicated region
    $region14: #{fnn_forward.1} parent=1 // pred_check
      _
    $region15: #{fnn_forward.1} parent=1 // pred_check_branch
      %21 = sbr.rel (0) target = $region17
    $region16: #{fnn_forward.1} parent=1 // pred_region
      %23 = vsyncadd [#allocation3], 0
      %s24 = sshll.u32 %s3, 4
      %s25 = int_to_ptr.hbm [resolvable:$true] %s24
      %s26 = sshll.u32 [#allocation2], 4
      %s27 = int_to_ptr.vmem [resolvable:$true] %s26
      %32 = dma.hbm_to_vmem [thread:$0]  %s25, 1024, %s27, [#allocation3], 64, 64, 4
    $region17: #{fnn_forward.1} parent=1 // pred_fallthru
      _
    // Predicated region
    $region18: #{fnn_forward.1} parent=1 // pred_check
      _
    $region19: #{fnn_forward.1} parent=1 // pred_check_branch
      %34 = sbr.rel (0) target = $region21
    $region20: #{fnn_forward.1} parent=1 // pred_region
      _
    $region21: #{fnn_forward.1} parent=1 // pred_fallthru
      _
    // Predicated region
    $region22: #{fnn_forward.1} parent=1 // pred_check
      _
    $region23: #{fnn_forward.1} parent=1 // pred_check_branch
      %36 = sbr.rel (0) target = $region25
    $region24: #{fnn_forward.1} parent=1 // pred_region
      %38 = vsyncadd [#allocation5], 0
      %s39 = sshll.u32 %s5, 4
      %s40 = int_to_ptr.hbm [resolvable:$true] %s39
      %s41 = sshll.u32 [#allocation4], 4
      %s42 = int_to_ptr.vmem [resolvable:$true] %s41
      %47 = dma.hbm_to_vmem [thread:$0]  %s40, 1024, %s42, [#allocation5], 64, 64, 4
    $region25: #{fnn_forward.1} parent=1 // pred_fallthru
      _
    // Predicated region
    $region26: #{fnn_forward.1} parent=1 // pred_check
      _
    $region27: #{fnn_forward.1} parent=1 // pred_check_branch
      %49 = sbr.rel (0) target = $region29
    $region28: #{fnn_forward.1} parent=1 // pred_region
      _
    $region29: #{fnn_forward.1} parent=1 // pred_fallthru
      _
    // Predicated region
    $region30: #{fnn_forward.1} parent=1 // pred_check
      _
    $region31: #{fnn_forward.1} parent=1 // pred_check_branch
      %51 = sbr.rel (0) target = $region33
    $region32: #{fnn_forward.1} parent=1 // pred_region
      %53 = dma.done [#allocation3], 1024
    $region33: #{fnn_forward.1} parent=1 // pred_fallthru
      _
    // Predicated region
    $region34: #{fnn_forward.1} parent=1 // pred_check
      _
    $region35: #{fnn_forward.1} parent=1 // pred_check_branch
      %55 = sbr.rel (0) target = $region37
    $region36: #{fnn_forward.1} parent=1 // pred_region
      %57 = dma.done [#allocation5], 1024
    $region37: #{fnn_forward.1} parent=1 // pred_fallthru
      _
    %v59 = vld [vmem:[%s0] sm:$0xf]
    %v60 = vld [vmem:[%s0 + $0x4] sm:$0xf]
    %v61 = vld [vmem:[%s1] sm:$0xf]
    %v62 = vld [vmem:[%s1 + $0x4] sm:$0xf]
    %v63 = vld [vmem:[%s1 + $0x8] sm:$0xf]
    %v64 = vld [vmem:[%s1 + $0xc] sm:$0xf]
    %v65 = vld [vmem:[%s2] sm:$0x1]
    %v67 = vperm.slane %v65, 0
    %v71 = vunpack.c.l.b16 %v59
    %v72 = vunpack.c.l.b16 %v60
    %v73 = vpack.c.b16 %v72, %v71
    %v78 = vunpack.c.l.b16 %v61
    %v79 = vunpack.c.l.b16 %v62
    %v80 = vunpack.c.l.b16 %v63
    %v81 = vunpack.c.l.b16 %v64
    %v82 = vpack.c.b16 %v79, %v78
    %v83 = vpack.c.b16 %v81, %v80
    %vm86 = vcmask 261120
    %v88 = vsel %vm86, %v73, 0
    %90 = vmatpush.bf16.msra.mxu0 0
    %91 = vmatpush.bf16.msra.mxu0 0
    %92 = vmatpush.bf16.msra.mxu0 0
    %93 = vmatpush.bf16.msra.mxu0 0
    %94 = vmatpush.bf16.msra.mxu0 0
    %95 = vmatpush.bf16.msra.mxu0 0
    %96 = vmatpush.bf16.msra.mxu0 %v83
    %97 = vmatpush.bf16.msra.mxu0 %v82
    %98 = vmatmul.bf16.gmra.mxu0 %v88
    %v99 = vpop.f32.mrf.mxu0
    %v100 = vadd.f32 %v67, %v99
    %v101 = vpop.f32.mrf.mxu0
    %v102 = vadd.f32 %v67, %v101
    %103 = vdwg.mxu0
    %v104 = vmax.f32 %v100, 0.0
    %v105 = vmax.f32 %v102, 0.0
    %v106 = vpack.c.bf16 %v105, %v104
    %v107 = vld [vmem:[#allocation2] sm:$0xf]
    %v108 = vld [vmem:[#allocation2 + $0x4] sm:$0xf]
    %v109 = vld [vmem:[#allocation2 + $0x8] sm:$0xf]
    %v110 = vld [vmem:[#allocation2 + $0xc] sm:$0xf]
    %v111 = vld [vmem:[#allocation2 + $0x10] sm:$0xf]
    %v112 = vld [vmem:[#allocation2 + $0x14] sm:$0xf]
    %v113 = vld [vmem:[#allocation2 + $0x18] sm:$0xf]
    %v114 = vld [vmem:[#allocation2 + $0x1c] sm:$0xf]
    %v115 = vld [vmem:[#allocation2 + $0x20] sm:$0xf]
    %v116 = vld [vmem:[#allocation2 + $0x24] sm:$0xf]
    %v117 = vld [vmem:[#allocation2 + $0x28] sm:$0xf]
    %v118 = vld [vmem:[#allocation2 + $0x2c] sm:$0xf]
    %v119 = vld [vmem:[#allocation2 + $0x30] sm:$0xf]
    %v120 = vld [vmem:[#allocation2 + $0x34] sm:$0xf]
    %v121 = vld [vmem:[#allocation2 + $0x38] sm:$0xf]
    %v122 = vld [vmem:[#allocation2 + $0x3c] sm:$0xf]
    %v123 = vld [vmem:[%s4] sm:$0x1]
    %v125 = vperm.slane %v123, 0
    %v143 = vunpack.c.l.b16 %v107
    %v144 = vunpack.c.l.b16 %v108
    %v145 = vunpack.c.l.b16 %v109
    %v146 = vunpack.c.l.b16 %v110
    %v147 = vunpack.c.l.b16 %v111
    %v148 = vunpack.c.l.b16 %v112
    %v149 = vunpack.c.l.b16 %v113
    %v150 = vunpack.c.l.b16 %v114
    %v151 = vunpack.c.l.b16 %v115
    %v152 = vunpack.c.l.b16 %v116
    %v153 = vunpack.c.l.b16 %v117
    %v154 = vunpack.c.l.b16 %v118
    %v155 = vunpack.c.l.b16 %v119
    %v156 = vunpack.c.l.b16 %v120
    %v157 = vunpack.c.l.b16 %v121
    %v158 = vunpack.c.l.b16 %v122
    %v159 = vpack.c.b16 %v144, %v143
    %v160 = vpack.c.b16 %v146, %v145
    %v161 = vpack.c.b16 %v148, %v147
    %v162 = vpack.c.b16 %v150, %v149
    %v163 = vpack.c.b16 %v152, %v151
    %v164 = vpack.c.b16 %v154, %v153
    %v165 = vpack.c.b16 %v156, %v155
    %v166 = vpack.c.b16 %v158, %v157
    %175 = vmatpush.bf16.msra.mxu0 %v166
    %176 = vmatpush.bf16.msra.mxu0 %v165
    %177 = vmatpush.bf16.msra.mxu0 %v164
    %178 = vmatpush.bf16.msra.mxu0 %v163
    %179 = vmatpush.bf16.msra.mxu0 %v162
    %180 = vmatpush.bf16.msra.mxu0 %v161
    %181 = vmatpush.bf16.msra.mxu0 %v160
    %182 = vmatpush.bf16.msra.mxu0 %v159
    %183 = vmatmul.bf16.gmra.mxu0 %v106
    %v184 = vpop.f32.mrf.mxu0
    %v185 = vadd.f32 %v125, %v184
    %v186 = vpop.f32.mrf.mxu0
    %v187 = vadd.f32 %v125, %v186
    %188 = vdwg.mxu0
    %v189 = vmax.f32 %v185, 0.0
    %v190 = vmax.f32 %v187, 0.0
    %v191 = vpack.c.bf16 %v190, %v189
    %v192 = vld [vmem:[#allocation4] sm:$0xf]
    %v193 = vld [vmem:[#allocation4 + $0x4] sm:$0xf]
    %v194 = vld [vmem:[#allocation4 + $0x8] sm:$0xf]
    %v195 = vld [vmem:[#allocation4 + $0xc] sm:$0xf]
    %v196 = vld [vmem:[#allocation4 + $0x10] sm:$0xf]
    %v197 = vld [vmem:[#allocation4 + $0x14] sm:$0xf]
    %v198 = vld [vmem:[#allocation4 + $0x18] sm:$0xf]
    %v199 = vld [vmem:[#allocation4 + $0x1c] sm:$0xf]
    %v200 = vld [vmem:[#allocation4 + $0x20] sm:$0xf]
    %v201 = vld [vmem:[#allocation4 + $0x24] sm:$0xf]
    %v202 = vld [vmem:[#allocation4 + $0x28] sm:$0xf]
    %v203 = vld [vmem:[#allocation4 + $0x2c] sm:$0xf]
    %v204 = vld [vmem:[#allocation4 + $0x30] sm:$0xf]
    %v205 = vld [vmem:[#allocation4 + $0x34] sm:$0xf]
    %v206 = vld [vmem:[#allocation4 + $0x38] sm:$0xf]
    %v207 = vld [vmem:[#allocation4 + $0x3c] sm:$0xf]
    %v208 = vld [vmem:[%s6] sm:$0x1]
    %v210 = vperm.slane %v208, 0
    %v228 = vunpack.c.l.b16 %v192
    %v229 = vunpack.c.l.b16 %v193
    %v230 = vunpack.c.l.b16 %v194
    %v231 = vunpack.c.l.b16 %v195
    %v232 = vunpack.c.l.b16 %v196
    %v233 = vunpack.c.l.b16 %v197
    %v234 = vunpack.c.l.b16 %v198
    %v235 = vunpack.c.l.b16 %v199
    %v236 = vunpack.c.l.b16 %v200
    %v237 = vunpack.c.l.b16 %v201
    %v238 = vunpack.c.l.b16 %v202
    %v239 = vunpack.c.l.b16 %v203
    %v240 = vunpack.c.l.b16 %v204
    %v241 = vunpack.c.l.b16 %v205
    %v242 = vunpack.c.l.b16 %v206
    %v243 = vunpack.c.l.b16 %v207
    %v244 = vpack.c.b16 %v229, %v228
    %v245 = vpack.c.b16 %v231, %v230
    %v246 = vpack.c.b16 %v233, %v232
    %v247 = vpack.c.b16 %v235, %v234
    %v248 = vpack.c.b16 %v237, %v236
    %v249 = vpack.c.b16 %v239, %v238
    %v250 = vpack.c.b16 %v241, %v240
    %v251 = vpack.c.b16 %v243, %v242
    %260 = vmatpush.bf16.msra.mxu0 %v251
    %261 = vmatpush.bf16.msra.mxu0 %v250
    %262 = vmatpush.bf16.msra.mxu0 %v249
    %263 = vmatpush.bf16.msra.mxu0 %v248
    %264 = vmatpush.bf16.msra.mxu0 %v247
    %265 = vmatpush.bf16.msra.mxu0 %v246
    %266 = vmatpush.bf16.msra.mxu0 %v245
    %267 = vmatpush.bf16.msra.mxu0 %v244
    %268 = vmatmul.bf16.gmra.mxu0 %v191
    %v269 = vpop.f32.mrf.mxu0
    %v270 = vadd.f32 %v210, %v269
    %v271 = vpop.f32.mrf.mxu0
    %v272 = vadd.f32 %v210, %v271
    %273 = vdwg.mxu0
    %274 = vst [vmem:[%s7] sm:$0xff] %v270
    %275 = vst [vmem:[%s7 + $0x8] sm:$0xff] %v272
    // Predicated region
    $region38: #{fnn_forward.1} parent=1 // pred_check
      _
    $region39: #{fnn_forward.1} parent=1 // pred_check_branch
      %277 = sbr.rel (0) target = $region41
    $region40: #{fnn_forward.1} parent=1 // pred_region
      _
    $region41: #{fnn_forward.1} parent=1 // pred_fallthru
      _
    // Predicated region
    $region42: #{fnn_forward.1} parent=1 // pred_check
      _
    $region43: #{fnn_forward.1} parent=1 // pred_check_branch
      %279 = sbr.rel (0) target = $region45
    $region44: #{fnn_forward.1} parent=1 // pred_region
      _
    $region45: #{fnn_forward.1} parent=1 // pred_fallthru
      _
    %280 = vsyncpa [#allocation3], 1
    %281 = vsyncpa [#allocation5], 1

</llo_original>
